<compile_context>
chip_gen: v6e
topology: v6e:2x2x1
jax: 0.10.0
libtpu: 0.0.40
codegen_flags: <defaults>
</compile_context>

<pallas_src>
import functools
import math

import jax
import jax.numpy as jnp
from jax.experimental import pallas as pl
from jax.experimental.pallas import tpu as pltpu


def _round_up(x: int, m: int) -> int:
    return ((x + m - 1) // m) * m


# ----------------------------- Pallas kernel --------------------------------
def ib_encoder_kernel(*refs, do_z_sampling: bool, z_std_clip_max: float, z_dims: int):
    if do_z_sampling:
        (x_ref, eps_ref, w1_ref, b1_ref, w2_ref, b2_ref,
         wmu_ref, bmu_ref, wstd_ref, bstd_ref, out_ref) = refs
    else:
        (x_ref, w1_ref, b1_ref, w2_ref, b2_ref,
         wmu_ref, bmu_ref, wstd_ref, bstd_ref, out_ref) = refs
        eps_ref = None

    x = x_ref[...]

    # FlattenMLPBase: two tanh layers on the MXU
    h1 = jnp.tanh(jnp.dot(x, w1_ref[...], preferred_element_type=jnp.float32)
                  + b1_ref[...])
    h2 = jnp.tanh(jnp.dot(h1, w2_ref[...], preferred_element_type=jnp.float32)
                  + b2_ref[...])

    # fc12 split into two lane-aligned heads (no mid-vreg column slice)
    mu = jnp.dot(h2, wmu_ref[...], preferred_element_type=jnp.float32) + bmu_ref[...]
    std_raw = jnp.dot(h2, wstd_ref[...], preferred_element_type=jnp.float32) + bstd_ref[...]
    std = jnp.minimum(jax.nn.softplus(std_raw), jnp.float32(z_std_clip_max))

    log_std = jnp.log(std)
    log_const = jnp.float32(0.5 * math.log(2.0 * math.pi))

    if do_z_sampling:
        eps = eps_ref[...]
        z = mu + std * eps                         # rsample (reparameterized)
        # Normal(mu, std).log_prob(z): (z - mu)/std == eps
        logp = (-0.5) * eps * eps - log_std - log_const
    else:
        z = mu                                     # dist.mean
        logp = -log_std - log_const                # (z - mu) == 0

    # single lane-dense store: [z | logp | mu | std]
    out_ref[...] = jnp.concatenate([z, logp, mu, std], axis=-1)


# ------------------------------ JAX wrapper ----------------------------------
def ib_encoder_forward(params, obs_image, rnn_hxs, masks, eps=None, *,
                       do_z_sampling: bool, z_std_clip_max: float, z_dims: int):
    """Returns (z_latent, z_log_prob, (mu, std), rnn_hxs) like IBEncoder.forward."""
    B = obs_image.shape[0]
    x = obs_image.reshape(B, -1).astype(jnp.float32)      # Flatten NCHW -> (B, C*H*W)
    K = x.shape[1]

    w1, b1, w2, b2, w12, b12 = (params[k] for k in
                                ("w1", "b1", "w2", "b2", "w12", "b12"))
    H = w1.shape[1]
    # split fc12 columns into mu / std heads (free XLA layout plumbing)
    w_mu, w_std = w12[:, :z_dims], w12[:, z_dims:]
    b_mu, b_std = b12[:, :z_dims], b12[:, z_dims:]

    # --- batch tiling: TM rows per grid step, weights stay VMEM-resident -----
    TM = 128 if B >= 128 else _round_up(B, 8)
    Bp = _round_up(B, TM)
    if Bp != B:
        x = jnp.pad(x, ((0, Bp - B), (0, 0)))
        if do_z_sampling:
            eps = jnp.pad(eps, ((0, Bp - B), (0, 0)))
    grid = (Bp // TM,)

    kernel = functools.partial(ib_encoder_kernel,
                               do_z_sampling=do_z_sampling,
                               z_std_clip_max=z_std_clip_max,
                               z_dims=z_dims)

    blocked = lambda shape: pl.BlockSpec(shape, lambda i: (i, 0))   # batch-tiled
    resident = lambda shape: pl.BlockSpec(shape, lambda i: (0, 0))  # weights/biases

    in_specs = [blocked((TM, K))]
    inputs = [x]
    if do_z_sampling:
        in_specs.append(blocked((TM, z_dims)))
        inputs.append(eps.astype(jnp.float32))
    in_specs += [resident((K, H)), resident((1, H)),
                 resident((H, H)), resident((1, H)),
                 resident((H, z_dims)), resident((1, z_dims)),
                 resident((H, z_dims)), resident((1, z_dims))]
    inputs += [w1, b1, w2, b2, w_mu, b_mu, w_std, b_std]

    out_width = 4 * z_dims
    out_shape = jax.ShapeDtypeStruct((Bp, out_width), jnp.float32)
    out_specs = pl.BlockSpec((TM, out_width), lambda i: (i, 0))

    # advisory cost hint so XLA can overlap the custom call with neighbours
    flops = 2 * Bp * (K * H + H * H + H * 2 * z_dims)
    transcendentals = Bp * (2 * H + 3 * z_dims)
    bytes_accessed = 4 * (Bp * K + (Bp * z_dims if do_z_sampling else 0)
                          + K * H + H * H + H * 2 * z_dims + 2 * H + 2 * z_dims
                          + Bp * out_width)
    cost = pl.CostEstimate(flops=flops, transcendentals=transcendentals,
                           bytes_accessed=bytes_accessed)

    packed = pl.pallas_call(
        kernel,
        grid=grid,
        out_shape=out_shape,
        in_specs=in_specs,
        out_specs=out_specs,
        cost_estimate=cost,
        compiler_params=pltpu.CompilerParams(
            dimension_semantics=("parallel",)),
    )(*inputs)

    packed = packed[:B]
    z = packed[:, 0 * z_dims:1 * z_dims]
    logp = packed[:, 1 * z_dims:2 * z_dims]
    mu = packed[:, 2 * z_dims:3 * z_dims]
    std = packed[:, 3 * z_dims:4 * z_dims]

    # base is non-recurrent: rnn_hxs (and masks) pass through untouched
    return z, logp, (mu, std), rnn_hxs


# --------------------------- parameter construction --------------------------
def make_params(key, in_dim, hidden_size, z_dims):
    """Orthogonal init (gain=sqrt(2)) for weights, zeros for biases, as in init_()."""
    k1, k2, k3 = jax.random.split(key, 3)
    ortho = jax.nn.initializers.orthogonal(scale=math.sqrt(2.0))
    # Weights stored as (in, out) so kernel uses x @ W (PyTorch Linear is x @ W.T).
    return {
        "w1": ortho(k1, (in_dim, hidden_size), jnp.float32),
        "b1": jnp.zeros((1, hidden_size), jnp.float32),
        "w2": ortho(k2, (hidden_size, hidden_size), jnp.float32),
        "b2": jnp.zeros((1, hidden_size), jnp.float32),
        "w12": ortho(k3, (hidden_size, 2 * z_dims), jnp.float32),
        "b12": jnp.zeros((1, 2 * z_dims), jnp.float32),
    }


def reference_forward(params, obs_image, eps, *, do_z_sampling, z_std_clip_max, z_dims):
    """Pure-JAX reference for correctness checking."""
    B = obs_image.shape[0]
    x = obs_image.reshape(B, -1).astype(jnp.float32)
    h1 = jnp.tanh(x @ params["w1"] + params["b1"])
    h2 = jnp.tanh(h1 @ params["w2"] + params["b2"])
    p = h2 @ params["w12"] + params["b12"]
    mu, std_raw = p[:, :z_dims], p[:, z_dims:]
    std = jnp.minimum(jax.nn.softplus(std_raw), z_std_clip_max)
    z = mu + std * eps if do_z_sampling else mu
    logp = -0.5 * ((z - mu) / std) ** 2 - jnp.log(std) - 0.5 * math.log(2.0 * math.pi)
    return z, logp, mu, std


# ---------------------------------- main --------------------------------------
if __name__ == "__main__":
    # Small synthetic shapes consistent with the module
    B, C, Himg, Wimg = 8, 4, 16, 16        # obs image, NCHW
    hidden_size = 32
    z_dims = 16
    z_std_clip_max = 2.0

    key = jax.random.PRNGKey(0)
    k_obs, k_eps, k_par = jax.random.split(key, 3)

    obs_image = jax.random.normal(k_obs, (B, C, Himg, Wimg), jnp.float32)
    eps = jax.random.normal(k_eps, (B, z_dims), jnp.float32)   # reparam noise
    rnn_hxs = jnp.zeros((B, hidden_size), jnp.float32)
    masks = jnp.ones((B, 1), jnp.float32)

    params = make_params(k_par, C * Himg * Wimg, hidden_size, z_dims)

    # ---- sampling path (rsample) ----
    z, logp, (mu, std), rnn_hxs_out = ib_encoder_forward(
        params, obs_image, rnn_hxs, masks, eps,
        do_z_sampling=True, z_std_clip_max=z_std_clip_max, z_dims=z_dims)
    jax.block_until_ready((z, logp, mu, std, rnn_hxs_out))

    z_r, logp_r, mu_r, std_r = reference_forward(
        params, obs_image, eps,
        do_z_sampling=True, z_std_clip_max=z_std_clip_max, z_dims=z_dims)
    assert jnp.allclose(z, z_r, atol=1e-4, rtol=1e-4)
    assert jnp.allclose(logp, logp_r, atol=1e-4, rtol=1e-4)
    assert jnp.allclose(mu, mu_r, atol=1e-4, rtol=1e-4)
    assert jnp.allclose(std, std_r, atol=1e-4, rtol=1e-4)

    # ---- deterministic path (dist.mean), no eps DMA ----
    z2, logp2, (mu2, std2), _ = ib_encoder_forward(
        params, obs_image, rnn_hxs, masks, None,
        do_z_sampling=False, z_std_clip_max=z_std_clip_max, z_dims=z_dims)
    jax.block_until_ready((z2, logp2, mu2, std2))

    z2_r, logp2_r, mu2_r, std2_r = reference_forward(
        params, obs_image, eps,
        do_z_sampling=False, z_std_clip_max=z_std_clip_max, z_dims=z_dims)
    assert jnp.allclose(z2, z2_r, atol=1e-4, rtol=1e-4)
    assert jnp.allclose(logp2, logp2_r, atol=1e-4, rtol=1e-4)
    assert jnp.allclose(mu2, mu2_r, atol=1e-4, rtol=1e-4)
    assert jnp.allclose(std2, std2_r, atol=1e-4, rtol=1e-4)

    print("KERNEL_OK")
</pallas_src>

<mosaic_0001>
module attributes {stable_mosaic.version = 11 : i64} {
  func.func @ib_encoder_kernel(%arg0: i32, %arg1: memref<8x1024xf32, #tpu.memory_space<vmem>>, %arg2: memref<8x16xf32, #tpu.memory_space<vmem>>, %arg3: memref<1024x32xf32, #tpu.memory_space<vmem>>, %arg4: memref<1x32xf32, #tpu.memory_space<vmem>>, %arg5: memref<32x32xf32, #tpu.memory_space<vmem>>, %arg6: memref<1x32xf32, #tpu.memory_space<vmem>>, %arg7: memref<32x16xf32, #tpu.memory_space<vmem>>, %arg8: memref<1x16xf32, #tpu.memory_space<vmem>>, %arg9: memref<32x16xf32, #tpu.memory_space<vmem>>, %arg10: memref<1x16xf32, #tpu.memory_space<vmem>>, %arg11: memref<8x64xf32, #tpu.memory_space<vmem>>) attributes {dimension_semantics = [#tpu.dimension_semantics<parallel>], iteration_bounds = array<i64: 1>, scalar_prefetch = 0 : i64, scratch_operands = 0 : i64, tpu.core_type = #tpu.core_type<tc>, window_params = [{transform_indices = @transform_0, window_bounds = array<i64: 8, 1024>}, {transform_indices = @transform_1, window_bounds = array<i64: 8, 16>}, {pipeline_mode = #tpu.pipeline_mode<synchronous>, transform_indices = @transform_2, window_bounds = array<i64: 1024, 32>}, {pipeline_mode = #tpu.pipeline_mode<synchronous>, transform_indices = @transform_3, window_bounds = array<i64: 1, 32>}, {pipeline_mode = #tpu.pipeline_mode<synchronous>, transform_indices = @transform_4, window_bounds = array<i64: 32, 32>}, {pipeline_mode = #tpu.pipeline_mode<synchronous>, transform_indices = @transform_5, window_bounds = array<i64: 1, 32>}, {pipeline_mode = #tpu.pipeline_mode<synchronous>, transform_indices = @transform_6, window_bounds = array<i64: 32, 16>}, {pipeline_mode = #tpu.pipeline_mode<synchronous>, transform_indices = @transform_7, window_bounds = array<i64: 1, 16>}, {pipeline_mode = #tpu.pipeline_mode<synchronous>, transform_indices = @transform_8, window_bounds = array<i64: 32, 16>}, {pipeline_mode = #tpu.pipeline_mode<synchronous>, transform_indices = @transform_9, window_bounds = array<i64: 1, 16>}, {transform_indices = @transform_10, window_bounds = array<i64: 8, 64>}]} {
    %c0 = arith.constant 0 : index
    %c0_0 = arith.constant 0 : index
    %0 = vector.load %arg1[%c0, %c0_0] : memref<8x1024xf32, #tpu.memory_space<vmem>>, vector<8x1024xf32>
    %c0_1 = arith.constant 0 : index
    %c0_2 = arith.constant 0 : index
    %1 = vector.load %arg3[%c0_1, %c0_2] : memref<1024x32xf32, #tpu.memory_space<vmem>>, vector<1024x32xf32>
    %cst = arith.constant dense<0.000000e+00> : vector<8x32xf32>
    %2 = tpu.matmul %0, %1, %cst {dimension_numbers = #tpu.dot_dimension_numbers<[1], [0], [0], [1], [0, 0, 1, 1], [], []>} : vector<8x1024xf32>, vector<1024x32xf32>, vector<8x32xf32> -> vector<8x32xf32>
    %c0_3 = arith.constant 0 : index
    %c0_4 = arith.constant 0 : index
    %3 = vector.load %arg4[%c0_3, %c0_4] : memref<1x32xf32, #tpu.memory_space<vmem>>, vector<1x32xf32>
    %4 = vector.broadcast %3 : vector<1x32xf32> to vector<8x32xf32>
    %5 = arith.addf %2, %4 : vector<8x32xf32>
    %6 = math.tanh %5 : vector<8x32xf32>
    %c0_5 = arith.constant 0 : index
    %c0_6 = arith.constant 0 : index
    %7 = vector.load %arg5[%c0_5, %c0_6] : memref<32x32xf32, #tpu.memory_space<vmem>>, vector<32x32xf32>
    %cst_7 = arith.constant dense<0.000000e+00> : vector<8x32xf32>
    %8 = tpu.matmul %6, %7, %cst_7 {dimension_numbers = #tpu.dot_dimension_numbers<[1], [0], [0], [1], [0, 0, 1, 1], [], []>} : vector<8x32xf32>, vector<32x32xf32>, vector<8x32xf32> -> vector<8x32xf32>
    %c0_8 = arith.constant 0 : index
    %c0_9 = arith.constant 0 : index
    %9 = vector.load %arg6[%c0_8, %c0_9] : memref<1x32xf32, #tpu.memory_space<vmem>>, vector<1x32xf32>
    %10 = vector.broadcast %9 : vector<1x32xf32> to vector<8x32xf32>
    %11 = arith.addf %8, %10 : vector<8x32xf32>
    %12 = math.tanh %11 : vector<8x32xf32>
    %c0_10 = arith.constant 0 : index
    %c0_11 = arith.constant 0 : index
    %13 = vector.load %arg7[%c0_10, %c0_11] : memref<32x16xf32, #tpu.memory_space<vmem>>, vector<32x16xf32>
    %cst_12 = arith.constant dense<0.000000e+00> : vector<8x16xf32>
    %14 = tpu.matmul %12, %13, %cst_12 {dimension_numbers = #tpu.dot_dimension_numbers<[1], [0], [0], [1], [0, 0, 1, 1], [], []>} : vector<8x32xf32>, vector<32x16xf32>, vector<8x16xf32> -> vector<8x16xf32>
    %c0_13 = arith.constant 0 : index
    %c0_14 = arith.constant 0 : index
    %15 = vector.load %arg8[%c0_13, %c0_14] : memref<1x16xf32, #tpu.memory_space<vmem>>, vector<1x16xf32>
    %16 = vector.broadcast %15 : vector<1x16xf32> to vector<8x16xf32>
    %17 = arith.addf %14, %16 : vector<8x16xf32>
    %c0_15 = arith.constant 0 : index
    %c0_16 = arith.constant 0 : index
    %18 = vector.load %arg9[%c0_15, %c0_16] : memref<32x16xf32, #tpu.memory_space<vmem>>, vector<32x16xf32>
    %cst_17 = arith.constant dense<0.000000e+00> : vector<8x16xf32>
    %19 = tpu.matmul %12, %18, %cst_17 {dimension_numbers = #tpu.dot_dimension_numbers<[1], [0], [0], [1], [0, 0, 1, 1], [], []>} : vector<8x32xf32>, vector<32x16xf32>, vector<8x16xf32> -> vector<8x16xf32>
    %c0_18 = arith.constant 0 : index
    %c0_19 = arith.constant 0 : index
    %20 = vector.load %arg10[%c0_18, %c0_19] : memref<1x16xf32, #tpu.memory_space<vmem>>, vector<1x16xf32>
    %21 = vector.broadcast %20 : vector<1x16xf32> to vector<8x16xf32>
    %22 = arith.addf %19, %21 : vector<8x16xf32>
    %cst_20 = arith.constant 0.000000e+00 : f32
    %23 = vector.broadcast %cst_20 : f32 to vector<8x16xf32>
    %24 = arith.maximumf %22, %23 : vector<8x16xf32>
    %25 = vector.broadcast %cst_20 : f32 to vector<8x16xf32>
    %26 = arith.subf %22, %25 : vector<8x16xf32>
    %27 = arith.cmpf one, %26, %26 : vector<8x16xf32>
    %28 = vector.broadcast %cst_20 : f32 to vector<8x16xf32>
    %29 = arith.addf %22, %28 : vector<8x16xf32>
    %30 = math.absf %26 : vector<8x16xf32>
    %cst_21 = arith.constant 0.000000e+00 : f32
    %31 = vector.broadcast %cst_21 : f32 to vector<8x16xf32>
    %32 = arith.subf %31, %30 : vector<8x16xf32>
    %33 = math.exp %32 : vector<8x16xf32>
    %34 = math.log1p %33 : vector<8x16xf32>
    %35 = arith.addf %24, %34 : vector<8x16xf32>
    %36 = arith.select %27, %29, %35 : vector<8x16xi1>, vector<8x16xf32>
    %cst_22 = arith.constant 2.000000e+00 : f32
    %37 = vector.broadcast %cst_22 : f32 to vector<8x16xf32>
    %38 = arith.minimumf %36, %37 : vector<8x16xf32>
    %39 = math.log %38 : vector<8x16xf32>
    %c0_23 = arith.constant 0 : index
    %c0_24 = arith.constant 0 : index
    %40 = vector.load %arg2[%c0_23, %c0_24] : memref<8x16xf32, #tpu.memory_space<vmem>>, vector<8x16xf32>
    %41 = arith.mulf %38, %40 : vector<8x16xf32>
    %42 = arith.addf %17, %41 : vector<8x16xf32>
    %cst_25 = arith.constant -5.000000e-01 : f32
    %43 = vector.broadcast %cst_25 : f32 to vector<8x16xf32>
    %44 = arith.mulf %43, %40 : vector<8x16xf32>
    %45 = arith.mulf %44, %40 : vector<8x16xf32>
    %46 = arith.subf %45, %39 : vector<8x16xf32>
    %cst_26 = arith.constant 0.918938517 : f32
    %47 = vector.broadcast %cst_26 : f32 to vector<8x16xf32>
    %48 = arith.subf %46, %47 : vector<8x16xf32>
    %49 = tpu.concatenate %42, %48, %17, %38 in 1 : vector<8x16xf32>, vector<8x16xf32>, vector<8x16xf32>, vector<8x16xf32> -> vector<8x64xf32>
    %c0_27 = arith.constant 0 : index
    %c0_28 = arith.constant 0 : index
    %50 = vector.load %arg11[%c0_27, %c0_28] : memref<8x64xf32, #tpu.memory_space<vmem>>, vector<8x64xf32>
    tpu.vector_store %arg11[%c0_27, %c0_28], %49 {strides = array<i32>} : memref<8x64xf32, #tpu.memory_space<vmem>>, vector<8x64xf32>,
    return
  }
  func.func @transform_0(%arg0: i32) -> (i32, i32) {
    %c0_i32 = arith.constant 0 : i32
    %c0_i32_0 = arith.constant 0 : i32
    return %arg0, %c0_i32 : i32, i32
  }
  func.func @transform_1(%arg0: i32) -> (i32, i32) {
    %c0_i32 = arith.constant 0 : i32
    %c0_i32_0 = arith.constant 0 : i32
    return %arg0, %c0_i32 : i32, i32
  }
  func.func @transform_2(%arg0: i32) -> (i32, i32) {
    %c0_i32 = arith.constant 0 : i32
    %c0_i32_0 = arith.constant 0 : i32
    %c0_i32_1 = arith.constant 0 : i32
    return %c0_i32, %c0_i32_0 : i32, i32
  }
  func.func @transform_3(%arg0: i32) -> (i32, i32) {
    %c0_i32 = arith.constant 0 : i32
    %c0_i32_0 = arith.constant 0 : i32
    %c0_i32_1 = arith.constant 0 : i32
    return %c0_i32, %c0_i32_0 : i32, i32
  }
  func.func @transform_4(%arg0: i32) -> (i32, i32) {
    %c0_i32 = arith.constant 0 : i32
    %c0_i32_0 = arith.constant 0 : i32
    %c0_i32_1 = arith.constant 0 : i32
    return %c0_i32, %c0_i32_0 : i32, i32
  }
  func.func @transform_5(%arg0: i32) -> (i32, i32) {
    %c0_i32 = arith.constant 0 : i32
    %c0_i32_0 = arith.constant 0 : i32
    %c0_i32_1 = arith.constant 0 : i32
    return %c0_i32, %c0_i32_0 : i32, i32
  }
  func.func @transform_6(%arg0: i32) -> (i32, i32) {
    %c0_i32 = arith.constant 0 : i32
    %c0_i32_0 = arith.constant 0 : i32
    %c0_i32_1 = arith.constant 0 : i32
    return %c0_i32, %c0_i32_0 : i32, i32
  }
  func.func @transform_7(%arg0: i32) -> (i32, i32) {
    %c0_i32 = arith.constant 0 : i32
    %c0_i32_0 = arith.constant 0 : i32
    %c0_i32_1 = arith.constant 0 : i32
    return %c0_i32, %c0_i32_0 : i32, i32
  }
  func.func @transform_8(%arg0: i32) -> (i32, i32) {
    %c0_i32 = arith.constant 0 : i32
    %c0_i32_0 = arith.constant 0 : i32
    %c0_i32_1 = arith.constant 0 : i32
    return %c0_i32, %c0_i32_0 : i32, i32
  }
  func.func @transform_9(%arg0: i32) -> (i32, i32) {
    %c0_i32 = arith.constant 0 : i32
    %c0_i32_0 = arith.constant 0 : i32
    %c0_i32_1 = arith.constant 0 : i32
    return %c0_i32, %c0_i32_0 : i32, i32
  }
  func.func @transform_10(%arg0: i32) -> (i32, i32) {
    %c0_i32 = arith.constant 0 : i32
    %c0_i32_0 = arith.constant 0 : i32
    return %arg0, %c0_i32 : i32, i32
  }
}

</mosaic_0001>

<llo_original>
// kernel: tpu_custom_call.1
$region0: #{tpu_custom_call.1}
  #allocation0 [shape = 'u32[]', space=smem, size = 0x4, offset = 0x4, fixed_abs, tag = 'smem constant byte address 0x4 - core index']
  #allocation1 [shape = 'u32[144,128]{1,0:T(1,128)}', space=vmem, size = 0x12000, scoped, tag = 'internal scratch']
  %s0 = inlined_call_operand.vmem [shape: f32[8,1024], index: 0, kind: input, shape index: {}]
  %s1 = inlined_call_operand.vmem [shape: f32[8,16], index: 1, kind: input, shape index: {}]
  %s2 = inlined_call_operand.vmem [shape: f32[1024,32], index: 2, kind: input, shape index: {}]
  %s3 = inlined_call_operand.vmem [shape: f32[1,32], index: 3, kind: input, shape index: {}]
  %s4 = inlined_call_operand.vmem [shape: f32[32,32], index: 4, kind: input, shape index: {}]
  %s5 = inlined_call_operand.vmem [shape: f32[1,32], index: 5, kind: input, shape index: {}]
  %s6 = inlined_call_operand.vmem [shape: f32[32,16], index: 6, kind: input, shape index: {}]
  %s7 = inlined_call_operand.vmem [shape: f32[1,16], index: 7, kind: input, shape index: {}]
  %s8 = inlined_call_operand.vmem [shape: f32[32,16], index: 8, kind: input, shape index: {}]
  %s9 = inlined_call_operand.vmem [shape: f32[1,16], index: 9, kind: input, shape index: {}]
  %s10 = inlined_call_operand.hbm [shape: f32[8,64], index: 10, kind: output, shape index: {}]
  %s11 = sld [smem:[#allocation0]]
  $region50: #{tpu_custom_call.1} parent=0
    _
  %s13 = ssub.s32 1, %s11
  %s14 = scalar_select 0, %s13, %s11
  $region1: #{tpu_custom_call.1} parent=0
    #allocation2 [shape = 'u8[4096]{0}', space=vmem, size = 0x1000, scoped, tag = 'output window, operand 0, single buffered']
    #allocation3 [shape = 's32[1]{0}', space=sflag, size = 0x4, scoped, tag = 'scoped memory for tpu_custom_call.1']
    %15 = vsyncpa [#allocation3], 0
    // Predicated region
    $region2: #{tpu_custom_call.1} parent=1 // pred_check
      _
    $region3: #{tpu_custom_call.1} parent=1 // pred_check_branch
      %17 = sbr.rel (0) target = $region5
    $region4: #{tpu_custom_call.1} parent=1 // pred_region
      _
    $region5: #{tpu_custom_call.1} parent=1 // pred_fallthru
      _
    // Predicated region
    $region6: #{tpu_custom_call.1} parent=1 // pred_check
      _
    $region7: #{tpu_custom_call.1} parent=1 // pred_check_branch
      %19 = sbr.rel (0) target = $region9
    $region8: #{tpu_custom_call.1} parent=1 // pred_region
      _
    $region9: #{tpu_custom_call.1} parent=1 // pred_fallthru
      _
    // Predicated region
    $region10: #{tpu_custom_call.1} parent=1 // pred_check
      _
    $region11: #{tpu_custom_call.1} parent=1 // pred_check_branch
      %21 = sbr.rel (0) target = $region13
    $region12: #{tpu_custom_call.1} parent=1 // pred_region
      _
    $region13: #{tpu_custom_call.1} parent=1 // pred_fallthru
      _
    // Predicated region
    $region14: #{tpu_custom_call.1} parent=1 // pred_check
      _
    $region15: #{tpu_custom_call.1} parent=1 // pred_check_branch
      %23 = sbr.rel (0) target = $region17
    $region16: #{tpu_custom_call.1} parent=1 // pred_region
      _
    $region17: #{tpu_custom_call.1} parent=1 // pred_fallthru
      _
    // Predicated region
    $region18: #{tpu_custom_call.1} parent=1 // pred_check
      _
    $region19: #{tpu_custom_call.1} parent=1 // pred_check_branch
      %25 = sbr.rel (0) target = $region21
    $region20: #{tpu_custom_call.1} parent=1 // pred_region
      _
    $region21: #{tpu_custom_call.1} parent=1 // pred_fallthru
      _
    // Predicated region
    $region22: #{tpu_custom_call.1} parent=1 // pred_check
      _
    $region23: #{tpu_custom_call.1} parent=1 // pred_check_branch
      %27 = sbr.rel (0) target = $region25
    $region24: #{tpu_custom_call.1} parent=1 // pred_region
      _
    $region25: #{tpu_custom_call.1} parent=1 // pred_fallthru
      _
    // Predicated region
    $region26: #{tpu_custom_call.1} parent=1 // pred_check
      _
    $region27: #{tpu_custom_call.1} parent=1 // pred_check_branch
      %29 = sbr.rel (0) target = $region29
    $region28: #{tpu_custom_call.1} parent=1 // pred_region
      _
    $region29: #{tpu_custom_call.1} parent=1 // pred_fallthru
      _
    // Predicated region
    $region30: #{tpu_custom_call.1} parent=1 // pred_check
      _
    $region31: #{tpu_custom_call.1} parent=1 // pred_check_branch
      %31 = sbr.rel (0) target = $region33
    $region32: #{tpu_custom_call.1} parent=1 // pred_region
      _
    $region33: #{tpu_custom_call.1} parent=1 // pred_fallthru
      _
    // Predicated region
    $region34: #{tpu_custom_call.1} parent=1 // pred_check
      _
    $region35: #{tpu_custom_call.1} parent=1 // pred_check_branch
      %33 = sbr.rel (0) target = $region37
    $region36: #{tpu_custom_call.1} parent=1 // pred_region
      _
    $region37: #{tpu_custom_call.1} parent=1 // pred_fallthru
      _
    // Predicated region
    $region38: #{tpu_custom_call.1} parent=1 // pred_check
      _
    $region39: #{tpu_custom_call.1} parent=1 // pred_check_branch
      %35 = sbr.rel (0) target = $region41
    $region40: #{tpu_custom_call.1} parent=1 // pred_region
      _
    $region41: #{tpu_custom_call.1} parent=1 // pred_fallthru
      _
    %v36 = vld [vmem:[%s0] sm:$0xff]
    %v37 = vld [vmem:[%s0 + $0x8] sm:$0xff]
    %v38 = vld [vmem:[%s0 + $0x10] sm:$0xff]
    %v39 = vld [vmem:[%s0 + $0x18] sm:$0xff]
    %v40 = vld [vmem:[%s0 + $0x20] sm:$0xff]
    %v41 = vld [vmem:[%s0 + $0x28] sm:$0xff]
    %v42 = vld [vmem:[%s0 + $0x30] sm:$0xff]
    %v43 = vld [vmem:[%s0 + $0x38] sm:$0xff]
    %v44 = vld [vmem:[%s2] sm:$0xff]
    %v45 = vld [vmem:[%s2 + $0x8] sm:$0xff]
    %v46 = vld [vmem:[%s2 + $0x10] sm:$0xff]
    %v47 = vld [vmem:[%s2 + $0x18] sm:$0xff]
    %v48 = vld [vmem:[%s2 + $0x20] sm:$0xff]
    %v49 = vld [vmem:[%s2 + $0x28] sm:$0xff]
    %v50 = vld [vmem:[%s2 + $0x30] sm:$0xff]
    %v51 = vld [vmem:[%s2 + $0x38] sm:$0xff]
    %v52 = vld [vmem:[%s2 + $0x40] sm:$0xff]
    %v53 = vld [vmem:[%s2 + $0x48] sm:$0xff]
    %v54 = vld [vmem:[%s2 + $0x50] sm:$0xff]
    %v55 = vld [vmem:[%s2 + $0x58] sm:$0xff]
    %v56 = vld [vmem:[%s2 + $0x60] sm:$0xff]
    %v57 = vld [vmem:[%s2 + $0x68] sm:$0xff]
    %v58 = vld [vmem:[%s2 + $0x70] sm:$0xff]
    %v59 = vld [vmem:[%s2 + $0x78] sm:$0xff]
    %v60 = vld [vmem:[%s2 + $0x80] sm:$0xff]
    %v61 = vld [vmem:[%s2 + $0x88] sm:$0xff]
    %v62 = vld [vmem:[%s2 + $0x90] sm:$0xff]
    %v63 = vld [vmem:[%s2 + $0x98] sm:$0xff]
    %v64 = vld [vmem:[%s2 + $0xa0] sm:$0xff]
    %v65 = vld [vmem:[%s2 + $0xa8] sm:$0xff]
    %v66 = vld [vmem:[%s2 + $0xb0] sm:$0xff]
    %v67 = vld [vmem:[%s2 + $0xb8] sm:$0xff]
    %v68 = vld [vmem:[%s2 + $0xc0] sm:$0xff]
    %v69 = vld [vmem:[%s2 + $0xc8] sm:$0xff]
    %v70 = vld [vmem:[%s2 + $0xd0] sm:$0xff]
    %v71 = vld [vmem:[%s2 + $0xd8] sm:$0xff]
    %v72 = vld [vmem:[%s2 + $0xe0] sm:$0xff]
    %v73 = vld [vmem:[%s2 + $0xe8] sm:$0xff]
    %v74 = vld [vmem:[%s2 + $0xf0] sm:$0xff]
    %v75 = vld [vmem:[%s2 + $0xf8] sm:$0xff]
    %v76 = vld [vmem:[%s2 + $0x100] sm:$0xff]
    %v77 = vld [vmem:[%s2 + $0x108] sm:$0xff]
    %v78 = vld [vmem:[%s2 + $0x110] sm:$0xff]
    %v79 = vld [vmem:[%s2 + $0x118] sm:$0xff]
    %v80 = vld [vmem:[%s2 + $0x120] sm:$0xff]
    %v81 = vld [vmem:[%s2 + $0x128] sm:$0xff]
    %v82 = vld [vmem:[%s2 + $0x130] sm:$0xff]
    %v83 = vld [vmem:[%s2 + $0x138] sm:$0xff]
    %v84 = vld [vmem:[%s2 + $0x140] sm:$0xff]
    %v85 = vld [vmem:[%s2 + $0x148] sm:$0xff]
    %v86 = vld [vmem:[%s2 + $0x150] sm:$0xff]
    %v87 = vld [vmem:[%s2 + $0x158] sm:$0xff]
    %v88 = vld [vmem:[%s2 + $0x160] sm:$0xff]
    %v89 = vld [vmem:[%s2 + $0x168] sm:$0xff]
    %v90 = vld [vmem:[%s2 + $0x170] sm:$0xff]
    %v91 = vld [vmem:[%s2 + $0x178] sm:$0xff]
    %v92 = vld [vmem:[%s2 + $0x180] sm:$0xff]
    %v93 = vld [vmem:[%s2 + $0x188] sm:$0xff]
    %v94 = vld [vmem:[%s2 + $0x190] sm:$0xff]
    %v95 = vld [vmem:[%s2 + $0x198] sm:$0xff]
    %v96 = vld [vmem:[%s2 + $0x1a0] sm:$0xff]
    %v97 = vld [vmem:[%s2 + $0x1a8] sm:$0xff]
    %v98 = vld [vmem:[%s2 + $0x1b0] sm:$0xff]
    %v99 = vld [vmem:[%s2 + $0x1b8] sm:$0xff]
    %v100 = vld [vmem:[%s2 + $0x1c0] sm:$0xff]
    %v101 = vld [vmem:[%s2 + $0x1c8] sm:$0xff]
    %v102 = vld [vmem:[%s2 + $0x1d0] sm:$0xff]
    %v103 = vld [vmem:[%s2 + $0x1d8] sm:$0xff]
    %v104 = vld [vmem:[%s2 + $0x1e0] sm:$0xff]
    %v105 = vld [vmem:[%s2 + $0x1e8] sm:$0xff]
    %v106 = vld [vmem:[%s2 + $0x1f0] sm:$0xff]
    %v107 = vld [vmem:[%s2 + $0x1f8] sm:$0xff]
    %v108 = vld [vmem:[%s2 + $0x200] sm:$0xff]
    %v109 = vld [vmem:[%s2 + $0x208] sm:$0xff]
    %v110 = vld [vmem:[%s2 + $0x210] sm:$0xff]
    %v111 = vld [vmem:[%s2 + $0x218] sm:$0xff]
    %v112 = vld [vmem:[%s2 + $0x220] sm:$0xff]
    %v113 = vld [vmem:[%s2 + $0x228] sm:$0xff]
    %v114 = vld [vmem:[%s2 + $0x230] sm:$0xff]
    %v115 = vld [vmem:[%s2 + $0x238] sm:$0xff]
    %v116 = vld [vmem:[%s2 + $0x240] sm:$0xff]
    %v117 = vld [vmem:[%s2 + $0x248] sm:$0xff]
    %v118 = vld [vmem:[%s2 + $0x250] sm:$0xff]
    %v119 = vld [vmem:[%s2 + $0x258] sm:$0xff]
    %v120 = vld [vmem:[%s2 + $0x260] sm:$0xff]
    %v121 = vld [vmem:[%s2 + $0x268] sm:$0xff]
    %v122 = vld [vmem:[%s2 + $0x270] sm:$0xff]
    %v123 = vld [vmem:[%s2 + $0x278] sm:$0xff]
    %v124 = vld [vmem:[%s2 + $0x280] sm:$0xff]
    %v125 = vld [vmem:[%s2 + $0x288] sm:$0xff]
    %v126 = vld [vmem:[%s2 + $0x290] sm:$0xff]
    %v127 = vld [vmem:[%s2 + $0x298] sm:$0xff]
    %v128 = vld [vmem:[%s2 + $0x2a0] sm:$0xff]
    %v129 = vld [vmem:[%s2 + $0x2a8] sm:$0xff]
    %v130 = vld [vmem:[%s2 + $0x2b0] sm:$0xff]
    %v131 = vld [vmem:[%s2 + $0x2b8] sm:$0xff]
    %v132 = vld [vmem:[%s2 + $0x2c0] sm:$0xff]
    %v133 = vld [vmem:[%s2 + $0x2c8] sm:$0xff]
    %v134 = vld [vmem:[%s2 + $0x2d0] sm:$0xff]
    %v135 = vld [vmem:[%s2 + $0x2d8] sm:$0xff]
    %v136 = vld [vmem:[%s2 + $0x2e0] sm:$0xff]
    %v137 = vld [vmem:[%s2 + $0x2e8] sm:$0xff]
    %v138 = vld [vmem:[%s2 + $0x2f0] sm:$0xff]
    %v139 = vld [vmem:[%s2 + $0x2f8] sm:$0xff]
    %v140 = vld [vmem:[%s2 + $0x300] sm:$0xff]
    %v141 = vld [vmem:[%s2 + $0x308] sm:$0xff]
    %v142 = vld [vmem:[%s2 + $0x310] sm:$0xff]
    %v143 = vld [vmem:[%s2 + $0x318] sm:$0xff]
    %v144 = vld [vmem:[%s2 + $0x320] sm:$0xff]
    %v145 = vld [vmem:[%s2 + $0x328] sm:$0xff]
    %v146 = vld [vmem:[%s2 + $0x330] sm:$0xff]
    %v147 = vld [vmem:[%s2 + $0x338] sm:$0xff]
    %v148 = vld [vmem:[%s2 + $0x340] sm:$0xff]
    %v149 = vld [vmem:[%s2 + $0x348] sm:$0xff]
    %v150 = vld [vmem:[%s2 + $0x350] sm:$0xff]
    %v151 = vld [vmem:[%s2 + $0x358] sm:$0xff]
    %v152 = vld [vmem:[%s2 + $0x360] sm:$0xff]
    %v153 = vld [vmem:[%s2 + $0x368] sm:$0xff]
    %v154 = vld [vmem:[%s2 + $0x370] sm:$0xff]
    %v155 = vld [vmem:[%s2 + $0x378] sm:$0xff]
    %v156 = vld [vmem:[%s2 + $0x380] sm:$0xff]
    %v157 = vld [vmem:[%s2 + $0x388] sm:$0xff]
    %v158 = vld [vmem:[%s2 + $0x390] sm:$0xff]
    %v159 = vld [vmem:[%s2 + $0x398] sm:$0xff]
    %v160 = vld [vmem:[%s2 + $0x3a0] sm:$0xff]
    %v161 = vld [vmem:[%s2 + $0x3a8] sm:$0xff]
    %v162 = vld [vmem:[%s2 + $0x3b0] sm:$0xff]
    %v163 = vld [vmem:[%s2 + $0x3b8] sm:$0xff]
    %v164 = vld [vmem:[%s2 + $0x3c0] sm:$0xff]
    %v165 = vld [vmem:[%s2 + $0x3c8] sm:$0xff]
    %v166 = vld [vmem:[%s2 + $0x3d0] sm:$0xff]
    %v167 = vld [vmem:[%s2 + $0x3d8] sm:$0xff]
    %v168 = vld [vmem:[%s2 + $0x3e0] sm:$0xff]
    %v169 = vld [vmem:[%s2 + $0x3e8] sm:$0xff]
    %v170 = vld [vmem:[%s2 + $0x3f0] sm:$0xff]
    %v171 = vld [vmem:[%s2 + $0x3f8] sm:$0xff]
    %v172 = vld [vmem:[%s3] sm:$0x1]
    %v174 = vlaneseq
    %v175 = vshrl.u32 %v174, 7
    %v176 = vsub.s32 0, %v175
    %v177 = vrot.slane %v172, %v176
    %179 = vmatprep.subr.mxu0 0.0
    %180 = vmatpush1.msra.mxu0 %v59
    %181 = vmatprep.subr.mxu0 0.0
    %182 = vmatpush1.msra.mxu0 %v58
    %183 = vmatprep.subr.mxu0 0.0
    %184 = vmatpush1.msra.mxu0 %v57
    %185 = vmatprep.subr.mxu0 0.0
    %186 = vmatpush1.msra.mxu0 %v56
    %187 = vmatprep.subr.mxu0 0.0
    %188 = vmatpush1.msra.mxu0 %v55
    %189 = vmatprep.subr.mxu0 0.0
    %190 = vmatpush1.msra.mxu0 %v54
    %191 = vmatprep.subr.mxu0 0.0
    %192 = vmatpush1.msra.mxu0 %v53
    %193 = vmatprep.subr.mxu0 0.0
    %194 = vmatpush1.msra.mxu0 %v52
    %195 = vmatprep.subr.mxu0 0.0
    %196 = vmatpush1.msra.mxu0 %v51
    %197 = vmatprep.subr.mxu0 0.0
    %198 = vmatpush1.msra.mxu0 %v50
    %199 = vmatprep.subr.mxu0 0.0
    %200 = vmatpush1.msra.mxu0 %v49
    %201 = vmatprep.subr.mxu0 0.0
    %202 = vmatpush1.msra.mxu0 %v48
    %203 = vmatprep.subr.mxu0 0.0
    %204 = vmatpush1.msra.mxu0 %v47
    %205 = vmatprep.subr.mxu0 0.0
    %206 = vmatpush1.msra.mxu0 %v46
    %207 = vmatprep.subr.mxu0 0.0
    %208 = vmatpush1.msra.mxu0 %v45
    %209 = vmatprep.subr.mxu0 0.0
    %210 = vmatpush1.msra.mxu0 %v44
    %211 = vmatprep.subr.mxu0 0.0
    %212 = vmatpush2.msra.mxu0 %v75
    %213 = vmatprep.subr.mxu0 0.0
    %214 = vmatpush2.msra.mxu0 %v74
    %215 = vmatprep.subr.mxu0 0.0
    %216 = vmatpush2.msra.mxu0 %v73
    %217 = vmatprep.subr.mxu0 0.0
    %218 = vmatpush2.msra.mxu0 %v72
    %219 = vmatprep.subr.mxu0 0.0
    %220 = vmatpush2.msra.mxu0 %v71
    %221 = vmatprep.subr.mxu0 0.0
    %222 = vmatpush2.msra.mxu0 %v70
    %223 = vmatprep.subr.mxu0 0.0
    %224 = vmatpush2.msra.mxu0 %v69
    %225 = vmatprep.subr.mxu0 0.0
    %226 = vmatpush2.msra.mxu0 %v68
    %227 = vmatprep.subr.mxu0 0.0
    %228 = vmatpush2.msra.mxu0 %v67
    %229 = vmatprep.subr.mxu0 0.0
    %230 = vmatpush2.msra.mxu0 %v66
    %231 = vmatprep.subr.mxu0 0.0
    %232 = vmatpush2.msra.mxu0 %v65
    %233 = vmatprep.subr.mxu0 0.0
    %234 = vmatpush2.msra.mxu0 %v64
    %235 = vmatprep.subr.mxu0 0.0
    %236 = vmatpush2.msra.mxu0 %v63
    %237 = vmatprep.subr.mxu0 0.0
    %238 = vmatpush2.msra.mxu0 %v62
    %239 = vmatprep.subr.mxu0 0.0
    %240 = vmatpush2.msra.mxu0 %v61
    %241 = vmatprep.subr.mxu0 0.0
    %242 = vmatpush2.msra.mxu0 %v60
    %243 = vmatprep.mubr.f32.mxu0 %v37
    %244 = vmatmul.mubr.f32.gmra.mxu0 %v36
    %v245 = vpop.f32.mrf.mxu0
    %v246 = vadd.f32 %v177, %v245
    %v247 = vpop.f32.mrf.mxu0
    %248 = vdwg.mxu0
    %249 = vmatprep.subr.mxu0 0.0
    %250 = vmatpush1.msra.mxu0 %v91
    %251 = vmatprep.subr.mxu0 0.0
    %252 = vmatpush1.msra.mxu0 %v90
    %253 = vmatprep.subr.mxu0 0.0
    %254 = vmatpush1.msra.mxu0 %v89
    %255 = vmatprep.subr.mxu0 0.0
    %256 = vmatpush1.msra.mxu0 %v88
    %257 = vmatprep.subr.mxu0 0.0
    %258 = vmatpush1.msra.mxu0 %v87
    %259 = vmatprep.subr.mxu0 0.0
    %260 = vmatpush1.msra.mxu0 %v86
    %261 = vmatprep.subr.mxu0 0.0
    %262 = vmatpush1.msra.mxu0 %v85
    %263 = vmatprep.subr.mxu0 0.0
    %264 = vmatpush1.msra.mxu0 %v84
    %265 = vmatprep.subr.mxu0 0.0
    %266 = vmatpush1.msra.mxu0 %v83
    %267 = vmatprep.subr.mxu0 0.0
    %268 = vmatpush1.msra.mxu0 %v82
    %269 = vmatprep.subr.mxu0 0.0
    %270 = vmatpush1.msra.mxu0 %v81
    %271 = vmatprep.subr.mxu0 0.0
    %272 = vmatpush1.msra.mxu0 %v80
    %273 = vmatprep.subr.mxu0 0.0
    %274 = vmatpush1.msra.mxu0 %v79
    %275 = vmatprep.subr.mxu0 0.0
    %276 = vmatpush1.msra.mxu0 %v78
    %277 = vmatprep.subr.mxu0 0.0
    %278 = vmatpush1.msra.mxu0 %v77
    %279 = vmatprep.subr.mxu0 0.0
    %280 = vmatpush1.msra.mxu0 %v76
    %281 = vmatprep.subr.mxu0 0.0
    %282 = vmatpush2.msra.mxu0 %v107
    %283 = vmatprep.subr.mxu0 0.0
    %284 = vmatpush2.msra.mxu0 %v106
    %285 = vmatprep.subr.mxu0 0.0
    %286 = vmatpush2.msra.mxu0 %v105
    %287 = vmatprep.subr.mxu0 0.0
    %288 = vmatpush2.msra.mxu0 %v104
    %289 = vmatprep.subr.mxu0 0.0
    %290 = vmatpush2.msra.mxu0 %v103
    %291 = vmatprep.subr.mxu0 0.0
    %292 = vmatpush2.msra.mxu0 %v102
    %293 = vmatprep.subr.mxu0 0.0
    %294 = vmatpush2.msra.mxu0 %v101
    %295 = vmatprep.subr.mxu0 0.0
    %296 = vmatpush2.msra.mxu0 %v100
    %297 = vmatprep.subr.mxu0 0.0
    %298 = vmatpush2.msra.mxu0 %v99
    %299 = vmatprep.subr.mxu0 0.0
    %300 = vmatpush2.msra.mxu0 %v98
    %301 = vmatprep.subr.mxu0 0.0
    %302 = vmatpush2.msra.mxu0 %v97
    %303 = vmatprep.subr.mxu0 0.0
    %304 = vmatpush2.msra.mxu0 %v96
    %305 = vmatprep.subr.mxu0 0.0
    %306 = vmatpush2.msra.mxu0 %v95
    %307 = vmatprep.subr.mxu0 0.0
    %308 = vmatpush2.msra.mxu0 %v94
    %309 = vmatprep.subr.mxu0 0.0
    %310 = vmatpush2.msra.mxu0 %v93
    %311 = vmatprep.subr.mxu0 0.0
    %312 = vmatpush2.msra.mxu0 %v92
    %313 = vmatprep.mubr.f32.mxu0 %v39
    %314 = vmatmul.mubr.f32.gmra.mxu0 %v38
    %v315 = vpop.f32.mrf.mxu0
    %v316 = vadd.f32 %v246, %v315
    %v317 = vpop.f32.mrf.mxu0
    %318 = vdwg.mxu0
    %319 = vmatprep.subr.mxu0 0.0
    %320 = vmatpush1.msra.mxu0 %v123
    %321 = vmatprep.subr.mxu0 0.0
    %322 = vmatpush1.msra.mxu0 %v122
    %323 = vmatprep.subr.mxu0 0.0
    %324 = vmatpush1.msra.mxu0 %v121
    %325 = vmatprep.subr.mxu0 0.0
    %326 = vmatpush1.msra.mxu0 %v120
    %327 = vmatprep.subr.mxu0 0.0
    %328 = vmatpush1.msra.mxu0 %v119
    %329 = vmatprep.subr.mxu0 0.0
    %330 = vmatpush1.msra.mxu0 %v118
    %331 = vmatprep.subr.mxu0 0.0
    %332 = vmatpush1.msra.mxu0 %v117
    %333 = vmatprep.subr.mxu0 0.0
    %334 = vmatpush1.msra.mxu0 %v116
    %335 = vmatprep.subr.mxu0 0.0
    %336 = vmatpush1.msra.mxu0 %v115
    %337 = vmatprep.subr.mxu0 0.0
    %338 = vmatpush1.msra.mxu0 %v114
    %339 = vmatprep.subr.mxu0 0.0
    %340 = vmatpush1.msra.mxu0 %v113
    %341 = vmatprep.subr.mxu0 0.0
    %342 = vmatpush1.msra.mxu0 %v112
    %343 = vmatprep.subr.mxu0 0.0
    %344 = vmatpush1.msra.mxu0 %v111
    %345 = vmatprep.subr.mxu0 0.0
    %346 = vmatpush1.msra.mxu0 %v110
    %347 = vmatprep.subr.mxu0 0.0
    %348 = vmatpush1.msra.mxu0 %v109
    %349 = vmatprep.subr.mxu0 0.0
    %350 = vmatpush1.msra.mxu0 %v108
    %351 = vmatprep.subr.mxu0 0.0
    %352 = vmatpush2.msra.mxu0 %v139
    %353 = vmatprep.subr.mxu0 0.0
    %354 = vmatpush2.msra.mxu0 %v138
    %355 = vmatprep.subr.mxu0 0.0
    %356 = vmatpush2.msra.mxu0 %v137
    %357 = vmatprep.subr.mxu0 0.0
    %358 = vmatpush2.msra.mxu0 %v136
    %359 = vmatprep.subr.mxu0 0.0
    %360 = vmatpush2.msra.mxu0 %v135
    %361 = vmatprep.subr.mxu0 0.0
    %362 = vmatpush2.msra.mxu0 %v134
    %363 = vmatprep.subr.mxu0 0.0
    %364 = vmatpush2.msra.mxu0 %v133
    %365 = vmatprep.subr.mxu0 0.0
    %366 = vmatpush2.msra.mxu0 %v132
    %367 = vmatprep.subr.mxu0 0.0
    %368 = vmatpush2.msra.mxu0 %v131
    %369 = vmatprep.subr.mxu0 0.0
    %370 = vmatpush2.msra.mxu0 %v130
    %371 = vmatprep.subr.mxu0 0.0
    %372 = vmatpush2.msra.mxu0 %v129
    %373 = vmatprep.subr.mxu0 0.0
    %374 = vmatpush2.msra.mxu0 %v128
    %375 = vmatprep.subr.mxu0 0.0
    %376 = vmatpush2.msra.mxu0 %v127
    %377 = vmatprep.subr.mxu0 0.0
    %378 = vmatpush2.msra.mxu0 %v126
    %379 = vmatprep.subr.mxu0 0.0
    %380 = vmatpush2.msra.mxu0 %v125
    %381 = vmatprep.subr.mxu0 0.0
    %382 = vmatpush2.msra.mxu0 %v124
    %383 = vmatprep.mubr.f32.mxu0 %v41
    %384 = vmatmul.mubr.f32.gmra.mxu0 %v40
    %v385 = vpop.f32.mrf.mxu0
    %v386 = vadd.f32 %v316, %v385
    %v387 = vpop.f32.mrf.mxu0
    %388 = vdwg.mxu0
    %389 = vmatprep.subr.mxu0 0.0
    %390 = vmatpush1.msra.mxu0 %v155
    %391 = vmatprep.subr.mxu0 0.0
    %392 = vmatpush1.msra.mxu0 %v154
    %393 = vmatprep.subr.mxu0 0.0
    %394 = vmatpush1.msra.mxu0 %v153
    %395 = vmatprep.subr.mxu0 0.0
    %396 = vmatpush1.msra.mxu0 %v152
    %397 = vmatprep.subr.mxu0 0.0
    %398 = vmatpush1.msra.mxu0 %v151
    %399 = vmatprep.subr.mxu0 0.0
    %400 = vmatpush1.msra.mxu0 %v150
    %401 = vmatprep.subr.mxu0 0.0
    %402 = vmatpush1.msra.mxu0 %v149
    %403 = vmatprep.subr.mxu0 0.0
    %404 = vmatpush1.msra.mxu0 %v148
    %405 = vmatprep.subr.mxu0 0.0
    %406 = vmatpush1.msra.mxu0 %v147
    %407 = vmatprep.subr.mxu0 0.0
    %408 = vmatpush1.msra.mxu0 %v146
    %409 = vmatprep.subr.mxu0 0.0
    %410 = vmatpush1.msra.mxu0 %v145
    %411 = vmatprep.subr.mxu0 0.0
    %412 = vmatpush1.msra.mxu0 %v144
    %413 = vmatprep.subr.mxu0 0.0
    %414 = vmatpush1.msra.mxu0 %v143
    %415 = vmatprep.subr.mxu0 0.0
    %416 = vmatpush1.msra.mxu0 %v142
    %417 = vmatprep.subr.mxu0 0.0
    %418 = vmatpush1.msra.mxu0 %v141
    %419 = vmatprep.subr.mxu0 0.0
    %420 = vmatpush1.msra.mxu0 %v140
    %421 = vmatprep.subr.mxu0 0.0
    %422 = vmatpush2.msra.mxu0 %v171
    %423 = vmatprep.subr.mxu0 0.0
    %424 = vmatpush2.msra.mxu0 %v170
    %425 = vmatprep.subr.mxu0 0.0
    %426 = vmatpush2.msra.mxu0 %v169
    %427 = vmatprep.subr.mxu0 0.0
    %428 = vmatpush2.msra.mxu0 %v168
    %429 = vmatprep.subr.mxu0 0.0
    %430 = vmatpush2.msra.mxu0 %v167
    %431 = vmatprep.subr.mxu0 0.0
    %432 = vmatpush2.msra.mxu0 %v166
    %433 = vmatprep.subr.mxu0 0.0
    %434 = vmatpush2.msra.mxu0 %v165
    %435 = vmatprep.subr.mxu0 0.0
    %436 = vmatpush2.msra.mxu0 %v164
    %437 = vmatprep.subr.mxu0 0.0
    %438 = vmatpush2.msra.mxu0 %v163
    %439 = vmatprep.subr.mxu0 0.0
    %440 = vmatpush2.msra.mxu0 %v162
    %441 = vmatprep.subr.mxu0 0.0
    %442 = vmatpush2.msra.mxu0 %v161
    %443 = vmatprep.subr.mxu0 0.0
    %444 = vmatpush2.msra.mxu0 %v160
    %445 = vmatprep.subr.mxu0 0.0
    %446 = vmatpush2.msra.mxu0 %v159
    %447 = vmatprep.subr.mxu0 0.0
    %448 = vmatpush2.msra.mxu0 %v158
    %449 = vmatprep.subr.mxu0 0.0
    %450 = vmatpush2.msra.mxu0 %v157
    %451 = vmatprep.subr.mxu0 0.0
    %452 = vmatpush2.msra.mxu0 %v156
    %453 = vmatprep.mubr.f32.mxu0 %v43
    %454 = vmatmul.mubr.f32.gmra.mxu0 %v42
    %v455 = vpop.f32.mrf.mxu0
    %v456 = vadd.f32 %v386, %v455
    %v457 = vpop.f32.mrf.mxu0
    %458 = vdwg.mxu0
    %v459 = vtanh.pop %v456
    %v460 = vld [vmem:[%s4] sm:$0xff]
    %v461 = vld [vmem:[%s4 + $0x8] sm:$0xff]
    %v462 = vld [vmem:[%s4 + $0x10] sm:$0xff]
    %v463 = vld [vmem:[%s4 + $0x18] sm:$0xff]
    %v464 = vld [vmem:[%s5] sm:$0x1]
    %v466 = vlaneseq
    %v467 = vshrl.u32 %v466, 7
    %v468 = vsub.s32 0, %v467
    %v469 = vrot.slane %v464, %v468
    %vm471 = vcmask 261120
    %v473 = vsel %vm471, %v459, 0
    %475 = vmatprep.subr.mxu0 0.0
    %476 = vmatpush1.msra.mxu0 0.0
    %477 = vmatprep.subr.mxu0 0.0
    %478 = vmatpush1.msra.mxu0 0.0
    %479 = vmatprep.subr.mxu0 0.0
    %480 = vmatpush1.msra.mxu0 0.0
    %481 = vmatprep.subr.mxu0 0.0
    %482 = vmatpush1.msra.mxu0 0.0
    %483 = vmatprep.subr.mxu0 0.0
    %484 = vmatpush1.msra.mxu0 0.0
    %485 = vmatprep.subr.mxu0 0.0
    %486 = vmatpush1.msra.mxu0 0.0
    %487 = vmatprep.subr.mxu0 0.0
    %488 = vmatpush1.msra.mxu0 0.0
    %489 = vmatprep.subr.mxu0 0.0
    %490 = vmatpush1.msra.mxu0 0.0
    %491 = vmatprep.subr.mxu0 0.0
    %492 = vmatpush1.msra.mxu0 0.0
    %493 = vmatprep.subr.mxu0 0.0
    %494 = vmatpush1.msra.mxu0 0.0
    %495 = vmatprep.subr.mxu0 0.0
    %496 = vmatpush1.msra.mxu0 0.0
    %497 = vmatprep.subr.mxu0 0.0
    %498 = vmatpush1.msra.mxu0 0.0
    %499 = vmatprep.subr.mxu0 0.0
    %500 = vmatpush1.msra.mxu0 %v463
    %501 = vmatprep.subr.mxu0 0.0
    %502 = vmatpush1.msra.mxu0 %v462
    %503 = vmatprep.subr.mxu0 0.0
    %504 = vmatpush1.msra.mxu0 %v461
    %505 = vmatprep.subr.mxu0 0.0
    %506 = vmatpush1.msra.mxu0 %v460
    %507 = vmatprep.subr.mxu0 0.0
    %508 = vmatpush2.msra.mxu0 0.0
    %509 = vmatprep.subr.mxu0 0.0
    %510 = vmatpush2.msra.mxu0 0.0
    %511 = vmatprep.subr.mxu0 0.0
    %512 = vmatpush2.msra.mxu0 0.0
    %513 = vmatprep.subr.mxu0 0.0
    %514 = vmatpush2.msra.mxu0 0.0
    %515 = vmatprep.subr.mxu0 0.0
    %516 = vmatpush2.msra.mxu0 0.0
    %517 = vmatprep.subr.mxu0 0.0
    %518 = vmatpush2.msra.mxu0 0.0
    %519 = vmatprep.subr.mxu0 0.0
    %520 = vmatpush2.msra.mxu0 0.0
    %521 = vmatprep.subr.mxu0 0.0
    %522 = vmatpush2.msra.mxu0 0.0
    %523 = vmatprep.subr.mxu0 0.0
    %524 = vmatpush2.msra.mxu0 0.0
    %525 = vmatprep.subr.mxu0 0.0
    %526 = vmatpush2.msra.mxu0 0.0
    %527 = vmatprep.subr.mxu0 0.0
    %528 = vmatpush2.msra.mxu0 0.0
    %529 = vmatprep.subr.mxu0 0.0
    %530 = vmatpush2.msra.mxu0 0.0
    %531 = vmatprep.subr.mxu0 0.0
    %532 = vmatpush2.msra.mxu0 0.0
    %533 = vmatprep.subr.mxu0 0.0
    %534 = vmatpush2.msra.mxu0 0.0
    %535 = vmatprep.subr.mxu0 0.0
    %536 = vmatpush2.msra.mxu0 0.0
    %537 = vmatprep.subr.mxu0 0.0
    %538 = vmatpush2.msra.mxu0 0.0
    %539 = vmatprep.mubr.f32.mxu0 0.0
    %540 = vmatmul.mubr.f32.gmra.mxu0 %v473
    %v541 = vpop.f32.mrf.mxu0
    %v542 = vadd.f32 %v469, %v541
    %v543 = vpop.f32.mrf.mxu0
    %544 = vdwg.mxu0
    %v545 = vtanh.pop %v542
    %v546 = vld [vmem:[%s6] sm:$0xff]
    %v547 = vld [vmem:[%s6 + $0x8] sm:$0xff]
    %v548 = vld [vmem:[%s6 + $0x10] sm:$0xff]
    %v549 = vld [vmem:[%s6 + $0x18] sm:$0xff]
    %v550 = vld [vmem:[%s7] sm:$0x1]
    %v552 = vlaneseq
    %v553 = vshrl.u32 %v552, 7
    %v554 = vsub.s32 0, %v553
    %v555 = vrot.slane %v550, %v554
    %v558 = vsel %vm471, %v545, 0
    %560 = vmatprep.subr.mxu0 0.0
    %561 = vmatpush1.msra.mxu0 0.0
    %562 = vmatprep.subr.mxu0 0.0
    %563 = vmatpush1.msra.mxu0 0.0
    %564 = vmatprep.subr.mxu0 0.0
    %565 = vmatpush1.msra.mxu0 0.0
    %566 = vmatprep.subr.mxu0 0.0
    %567 = vmatpush1.msra.mxu0 0.0
    %568 = vmatprep.subr.mxu0 0.0
    %569 = vmatpush1.msra.mxu0 0.0
    %570 = vmatprep.subr.mxu0 0.0
    %571 = vmatpush1.msra.mxu0 0.0
    %572 = vmatprep.subr.mxu0 0.0
    %573 = vmatpush1.msra.mxu0 0.0
    %574 = vmatprep.subr.mxu0 0.0
    %575 = vmatpush1.msra.mxu0 0.0
    %576 = vmatprep.subr.mxu0 0.0
    %577 = vmatpush1.msra.mxu0 0.0
    %578 = vmatprep.subr.mxu0 0.0
    %579 = vmatpush1.msra.mxu0 0.0
    %580 = vmatprep.subr.mxu0 0.0
    %581 = vmatpush1.msra.mxu0 0.0
    %582 = vmatprep.subr.mxu0 0.0
    %583 = vmatpush1.msra.mxu0 0.0
    %584 = vmatprep.subr.mxu0 0.0
    %585 = vmatpush1.msra.mxu0 %v549
    %586 = vmatprep.subr.mxu0 0.0
    %587 = vmatpush1.msra.mxu0 %v548
    %588 = vmatprep.subr.mxu0 0.0
    %589 = vmatpush1.msra.mxu0 %v547
    %590 = vmatprep.subr.mxu0 0.0
    %591 = vmatpush1.msra.mxu0 %v546
    %592 = vmatprep.subr.mxu0 0.0
    %593 = vmatpush2.msra.mxu0 0.0
    %594 = vmatprep.subr.mxu0 0.0
    %595 = vmatpush2.msra.mxu0 0.0
    %596 = vmatprep.subr.mxu0 0.0
    %597 = vmatpush2.msra.mxu0 0.0
    %598 = vmatprep.subr.mxu0 0.0
    %599 = vmatpush2.msra.mxu0 0.0
    %600 = vmatprep.subr.mxu0 0.0
    %601 = vmatpush2.msra.mxu0 0.0
    %602 = vmatprep.subr.mxu0 0.0
    %603 = vmatpush2.msra.mxu0 0.0
    %604 = vmatprep.subr.mxu0 0.0
    %605 = vmatpush2.msra.mxu0 0.0
    %606 = vmatprep.subr.mxu0 0.0
    %607 = vmatpush2.msra.mxu0 0.0
    %608 = vmatprep.subr.mxu0 0.0
    %609 = vmatpush2.msra.mxu0 0.0
    %610 = vmatprep.subr.mxu0 0.0
    %611 = vmatpush2.msra.mxu0 0.0
    %612 = vmatprep.subr.mxu0 0.0
    %613 = vmatpush2.msra.mxu0 0.0
    %614 = vmatprep.subr.mxu0 0.0
    %615 = vmatpush2.msra.mxu0 0.0
    %616 = vmatprep.subr.mxu0 0.0
    %617 = vmatpush2.msra.mxu0 0.0
    %618 = vmatprep.subr.mxu0 0.0
    %619 = vmatpush2.msra.mxu0 0.0
    %620 = vmatprep.subr.mxu0 0.0
    %621 = vmatpush2.msra.mxu0 0.0
    %622 = vmatprep.subr.mxu0 0.0
    %623 = vmatpush2.msra.mxu0 0.0
    %624 = vmatprep.mubr.f32.mxu0 0.0
    %625 = vmatmul.mubr.f32.gmra.mxu0 %v558
    %v626 = vpop.f32.mrf.mxu0
    %v627 = vadd.f32 %v555, %v626
    %v628 = vpop.f32.mrf.mxu0
    %629 = vdwg.mxu0
    %v630 = vld [vmem:[%s8] sm:$0xff]
    %v631 = vld [vmem:[%s8 + $0x8] sm:$0xff]
    %v632 = vld [vmem:[%s8 + $0x10] sm:$0xff]
    %v633 = vld [vmem:[%s8 + $0x18] sm:$0xff]
    %v634 = vld [vmem:[%s9] sm:$0x1]
    %v636 = vlaneseq
    %v637 = vshrl.u32 %v636, 7
    %v638 = vsub.s32 0, %v637
    %v639 = vrot.slane %v634, %v638
    %641 = vmatprep.subr.mxu0 0.0
    %642 = vmatpush1.msra.mxu0 0.0
    %643 = vmatprep.subr.mxu0 0.0
    %644 = vmatpush1.msra.mxu0 0.0
    %645 = vmatprep.subr.mxu0 0.0
    %646 = vmatpush1.msra.mxu0 0.0
    %647 = vmatprep.subr.mxu0 0.0
    %648 = vmatpush1.msra.mxu0 0.0
    %649 = vmatprep.subr.mxu0 0.0
    %650 = vmatpush1.msra.mxu0 0.0
    %651 = vmatprep.subr.mxu0 0.0
    %652 = vmatpush1.msra.mxu0 0.0
    %653 = vmatprep.subr.mxu0 0.0
    %654 = vmatpush1.msra.mxu0 0.0
    %655 = vmatprep.subr.mxu0 0.0
    %656 = vmatpush1.msra.mxu0 0.0
    %657 = vmatprep.subr.mxu0 0.0
    %658 = vmatpush1.msra.mxu0 0.0
    %659 = vmatprep.subr.mxu0 0.0
    %660 = vmatpush1.msra.mxu0 0.0
    %661 = vmatprep.subr.mxu0 0.0
    %662 = vmatpush1.msra.mxu0 0.0
    %663 = vmatprep.subr.mxu0 0.0
    %664 = vmatpush1.msra.mxu0 0.0
    %665 = vmatprep.subr.mxu0 0.0
    %666 = vmatpush1.msra.mxu0 %v633
    %667 = vmatprep.subr.mxu0 0.0
    %668 = vmatpush1.msra.mxu0 %v632
    %669 = vmatprep.subr.mxu0 0.0
    %670 = vmatpush1.msra.mxu0 %v631
    %671 = vmatprep.subr.mxu0 0.0
    %672 = vmatpush1.msra.mxu0 %v630
    %673 = vmatprep.subr.mxu0 0.0
    %674 = vmatpush2.msra.mxu0 0.0
    %675 = vmatprep.subr.mxu0 0.0
    %676 = vmatpush2.msra.mxu0 0.0
    %677 = vmatprep.subr.mxu0 0.0
    %678 = vmatpush2.msra.mxu0 0.0
    %679 = vmatprep.subr.mxu0 0.0
    %680 = vmatpush2.msra.mxu0 0.0
    %681 = vmatprep.subr.mxu0 0.0
    %682 = vmatpush2.msra.mxu0 0.0
    %683 = vmatprep.subr.mxu0 0.0
    %684 = vmatpush2.msra.mxu0 0.0
    %685 = vmatprep.subr.mxu0 0.0
    %686 = vmatpush2.msra.mxu0 0.0
    %687 = vmatprep.subr.mxu0 0.0
    %688 = vmatpush2.msra.mxu0 0.0
    %689 = vmatprep.subr.mxu0 0.0
    %690 = vmatpush2.msra.mxu0 0.0
    %691 = vmatprep.subr.mxu0 0.0
    %692 = vmatpush2.msra.mxu0 0.0
    %693 = vmatprep.subr.mxu0 0.0
    %694 = vmatpush2.msra.mxu0 0.0
    %695 = vmatprep.subr.mxu0 0.0
    %696 = vmatpush2.msra.mxu0 0.0
    %697 = vmatprep.subr.mxu0 0.0
    %698 = vmatpush2.msra.mxu0 0.0
    %699 = vmatprep.subr.mxu0 0.0
    %700 = vmatpush2.msra.mxu0 0.0
    %701 = vmatprep.subr.mxu0 0.0
    %702 = vmatpush2.msra.mxu0 0.0
    %703 = vmatprep.subr.mxu0 0.0
    %704 = vmatpush2.msra.mxu0 0.0
    %705 = vmatprep.mubr.f32.mxu0 0.0
    %706 = vmatmul.mubr.f32.gmra.mxu0 %v558
    %v707 = vpop.f32.mrf.mxu0
    %v708 = vadd.f32 %v639, %v707
    %v709 = vpop.f32.mrf.mxu0
    %710 = vdwg.mxu0
    %v711 = vmax.f32 %v708, 0.0
    %vm712 = vcmp.ne.f32.partialorder %v708, %v708
    %v713 = vadd.f32 %v708, 0.0
    %v714 = vand.u32 2147483647, %v708
    %v715 = vsub.f32 0.0, %v714
    %v716 = vmul.f32 %v715, 1.442695
    %v717 = vpow.pop %v716
    %v718 = vadd.f32 %v717, 1.0
    %v719 = vlog2.pop %v718
    %v720 = vmul.f32 %v719, 0.6931472
    %v721 = vmul.f32 -0.5, %v717
    %v722 = vadd.f32 %v721, 1.0
    %v723 = vmul.f32 %v722, %v717
    %v724 = vand.u32 2147483647, %v717
    %vm725 = vcmp.lt.f32.partialorder %v724, 0.0004427343
    %v726 = vsel %vm725, %v723, %v720
    %v727 = vadd.f32 %v711, %v726
    %v728 = vsel %vm712, %v713, %v727
    %v729 = vmin.f32 %v728, 2.0
    %v730 = vlog2.pop %v729
    %v731 = vmul.f32 %v730, 0.6931472
    %v732 = vld [vmem:[%s1] sm:$0xff]
    %v733 = vmul.f32 %v729, %v732
    %v734 = vadd.f32 %v627, %v733
    %v735 = vmul.f32 %v732, -0.5
    %v736 = vmul.f32 %v735, %v732
    %v737 = vsub.f32 %v736, %v731
    %v738 = vsub.f32 %v737, 0.9189385
    %740 = vrot.lane.b32.xlu0 %v738, 16
    %v741 = vpop.permute.xlu0 %740
    %744 = vrot.lane.b32.xlu0 %v627, 32
    %v745 = vpop.permute.xlu0 %744
    %748 = vrot.lane.b32.xlu0 %v729, 48
    %v749 = vpop.permute.xlu0 %748
    %vm751 = vcmask 130048
    %v752 = vsel %vm751, %v734, %v741
    %v753 = vsel %vm471, %v752, %v745
    %vm754 = vcmask 392192
    %v755 = vsel %vm754, %v753, %v749
    %vm756 = vcmask 523264
    %757 = vst.msk [vmem:[#allocation2] sm:$0xff] %vm756, %v755
    // Predicated region
    $region42: #{tpu_custom_call.1} parent=1 // pred_check
      _
    $region43: #{tpu_custom_call.1} parent=1 // pred_check_branch
      %759 = sbr.rel (0) target = $region45
    $region44: #{tpu_custom_call.1} parent=1 // pred_region
      %s761 = ssub.s32 128, 128
      %762 = vsyncadd [#allocation3], %s761
      %s764 = sshll.u32 [#allocation2], 4
      %s765 = int_to_ptr.vmem [resolvable:$true] %s764
      %767 = dma.vmem_to_hbm [thread:$0]  %s765, 128, %s10, [#allocation3]
    $region45: #{tpu_custom_call.1} parent=1 // pred_fallthru
      _
    // Predicated region
    $region46: #{tpu_custom_call.1} parent=1 // pred_check
      _
    $region47: #{tpu_custom_call.1} parent=1 // pred_check_branch
      %769 = sbr.rel (0) target = $region49
    $region48: #{tpu_custom_call.1} parent=1 // pred_region
      %770 = dma.done [#allocation3], 128
    $region49: #{tpu_custom_call.1} parent=1 // pred_fallthru
      _
    %771 = vsyncpa [#allocation3], 1

</llo_original>
